<compile_context>
chip_gen: v7x
topology: tpu7x:2x2x1
jax: 0.10.0
libtpu: 0.0.40
codegen_flags: <defaults>
</compile_context>

<pallas_src>
import jax
import jax.numpy as jnp
from jax import lax
from jax.experimental import pallas as pl
from jax.experimental.pallas import tpu as pltpu


def _round_up(x: int, m: int) -> int:
    return ((x + m - 1) // m) * m


def _vmem_limit(*nbytes: int) -> int:
    # double-buffered operands + margin, clamped to what every TPU generation allows.
    total = 2 * sum(int(n) for n in nbytes) + (4 << 20)
    return int(min(max(total, 32 << 20), 64 << 20))


# ----------------------------------------------------------------------------- kernels


def _proj_kernel(x_ref, w_ref, b_ref, o_ref):
    """One large rows @ W + b tile (used for the hoisted i2h projection)."""
    o_ref[...] = (jnp.dot(x_ref[...], w_ref[...],
                          preferred_element_type=jnp.float32)
                  + b_ref[...]).astype(o_ref.dtype)


def _head_kernel(h_ref, w_ref, b_ref, o_ref):
    """Output head: logits = H @ Wo + bo (mask folded into bo), then log-softmax."""
    logits = (jnp.dot(h_ref[...], w_ref[...],
                      preferred_element_type=jnp.float32)
              + b_ref[...])
    m = jnp.max(logits, axis=-1, keepdims=True)
    shifted = logits - m
    lse = jnp.log(jnp.sum(jnp.exp(shifted), axis=-1, keepdims=True))
    o_ref[...] = (shifted - lse).astype(o_ref.dtype)


def _make_recurrence_kernel(tt: int, t_valid: int, mask_tail: bool):
    """Serial recurrence over a chunk of `tt` time steps; only h2h + tanh per step."""

    def kernel(xw_ref, h0_ref, wh_ref, hseq_ref, hfin_ref, h_scr):
        blk = pl.program_id(0)

        @pl.when(blk == 0)
        def _():
            h_scr[...] = h0_ref[...]

        def step(i, h):
            pre = xw_ref[i] + jnp.dot(h.astype(jnp.bfloat16), wh_ref[...],
                                      preferred_element_type=jnp.float32)
            h_new = jnp.tanh(pre)                       # f32 carry
            hseq_ref[i] = h_new.astype(hseq_ref.dtype)  # bf16 stream-out
            if mask_tail:
                # Padded trailing time steps must not advance the carry.
                h_new = jnp.where(blk * tt + i < t_valid, h_new, h)
            return h_new

        h_last = lax.fori_loop(0, tt, step, h_scr[...], unroll=True)
        h_scr[...] = h_last

        @pl.when(blk == pl.num_programs(0) - 1)
        def _():
            hfin_ref[...] = h_last.astype(hfin_ref.dtype)

    return kernel


# ----------------------------------------------------------------------------- wrapper


def rnn_forward_seq(xs, h0, params):
    """Run T RNN steps.

    xs: (T, B, input_size), h0: (B, hidden_size).
    Returns (log-softmax outputs (T, B, output_size), final hidden (B, hidden_size)).
    """
    wi, bi, wh, bh, wo, bo = params
    T, B, I = xs.shape
    H = wh.shape[1]
    O = wo.shape[1]

    Bp = _round_up(B, 16)        # bf16 vregs pack 16 sublanes
    Ip = _round_up(I, 128)
    Hp = _round_up(H, 128)
    Op = _round_up(O, 128)

    TT = min(T, 16)              # time-chunk size per grid step
    Tp = _round_up(T, TT)
    n_chunks = Tp // TT
    mask_tail = (Tp != T)

    f32, bf16 = jnp.float32, jnp.bfloat16

    # ---- pad / cast / pre-combine once at the wrapper level ----
    xs_p = jnp.zeros((Tp, Bp, Ip), bf16).at[:T, :B, :I].set(xs.astype(bf16))
    h0_p = jnp.zeros((Bp, Hp), f32).at[:B, :H].set(h0.astype(f32))
    wi_p = jnp.zeros((Ip, Hp), bf16).at[:I, :H].set(wi.astype(bf16))
    wh_p = jnp.zeros((Hp, Hp), bf16).at[:H, :H].set(wh.astype(bf16))
    wo_p = jnp.zeros((Hp, Op), bf16).at[:H, :O].set(wo.astype(bf16))
    # bi and bh only ever appear summed -> single combined bias.
    b_ih = jnp.zeros((1, Hp), f32).at[:, :H].set((bi + bh).astype(f32))
    # Fold the padded-output-lane mask into bo: padded Wo columns are zero, so padded
    # logits become exactly -1e30 (finite -> no inf-inf NaN) and vanish in softmax.
    bo_p = jnp.full((1, Op), jnp.float32(-1e30), f32).at[:, :O].set(bo.astype(f32))

    R = Tp * Bp          # flattened (time * padded-batch) rows
    RT = TT * Bp         # row tile = one time chunk worth of rows

    const2 = lambda t: (0, 0)

    # ---- 1) hoisted i2h projection: one big matmul over all rows (parallel) ----
    xw_flat = pl.pallas_call(
        _proj_kernel,
        out_shape=jax.ShapeDtypeStruct((R, Hp), f32),
        grid_spec=pltpu.PrefetchScalarGridSpec(
            num_scalar_prefetch=0,
            grid=(n_chunks,),
            in_specs=[
                pl.BlockSpec((RT, Ip), lambda t: (t, 0)),   # x rows (streamed)
                pl.BlockSpec((Ip, Hp), const2),             # Wi (resident)
                pl.BlockSpec((1, Hp), const2),              # bi + bh (resident)
            ],
            out_specs=pl.BlockSpec((RT, Hp), lambda t: (t, 0)),
        ),
        compiler_params=pltpu.CompilerParams(
            dimension_semantics=("parallel",),
            vmem_limit_bytes=_vmem_limit(RT * Ip * 2, Ip * Hp * 2,
                                         Hp * 4, RT * Hp * 4),
        ),
    )(xs_p.reshape(R, Ip), wi_p, b_ih)
    xw = xw_flat.reshape(Tp, Bp, Hp)

    # ---- 2) serial recurrence: h = tanh(xw_t + h @ Wh), chunked over time ----
    h_seq, h_final = pl.pallas_call(
        _make_recurrence_kernel(TT, T, mask_tail),
        out_shape=(
            jax.ShapeDtypeStruct((Tp, Bp, Hp), bf16),   # h_t stream (bf16 writeback)
            jax.ShapeDtypeStruct((Bp, Hp), f32),        # final hidden
        ),
        grid_spec=pltpu.PrefetchScalarGridSpec(
            num_scalar_prefetch=0,
            grid=(n_chunks,),
            in_specs=[
                pl.BlockSpec((TT, Bp, Hp), lambda t: (t, 0, 0)),  # precomputed i2h
                pl.BlockSpec((Bp, Hp), const2),                   # h0 (resident)
                pl.BlockSpec((Hp, Hp), const2),                   # Wh (resident)
            ],
            out_specs=(
                pl.BlockSpec((TT, Bp, Hp), lambda t: (t, 0, 0)),  # h_t (streamed)
                pl.BlockSpec((Bp, Hp), const2),                   # final hidden
            ),
            scratch_shapes=[pltpu.VMEM((Bp, Hp), f32)],           # f32 hidden carry
        ),
        compiler_params=pltpu.CompilerParams(
            dimension_semantics=("arbitrary",),                   # sequential in time
            vmem_limit_bytes=_vmem_limit(TT * Bp * Hp * 4, Bp * Hp * 4,
                                         Hp * Hp * 2, TT * Bp * Hp * 2,
                                         Bp * Hp * 4),
        ),
    )(xw, h0_p, wh_p)

    # ---- 3) hoisted output head: logits + log-softmax over all rows (parallel) ----
    out_flat = pl.pallas_call(
        _head_kernel,
        out_shape=jax.ShapeDtypeStruct((R, Op), f32),
        grid_spec=pltpu.PrefetchScalarGridSpec(
            num_scalar_prefetch=0,
            grid=(n_chunks,),
            in_specs=[
                pl.BlockSpec((RT, Hp), lambda t: (t, 0)),   # h rows (streamed, bf16)
                pl.BlockSpec((Hp, Op), const2),             # Wo (resident)
                pl.BlockSpec((1, Op), const2),              # bo with folded mask
            ],
            out_specs=pl.BlockSpec((RT, Op), lambda t: (t, 0)),
        ),
        compiler_params=pltpu.CompilerParams(
            dimension_semantics=("parallel",),
            vmem_limit_bytes=_vmem_limit(RT * Hp * 2, Hp * Op * 2,
                                         Op * 4, RT * Op * 4),
        ),
    )(h_seq.reshape(R, Hp), wo_p, bo_p)

    out = out_flat.reshape(Tp, Bp, Op)[:T, :B, :O]
    return out, h_final[:B, :H]


def rnn_forward(x, hidden, params):
    """Single-step forward matching the PyTorch module signature exactly.

    Note: for decode-style loops prefer rnn_forward_seq (this path re-pads and
    re-DMAs the weights every call).
    """
    out, h_new = rnn_forward_seq(x[None], hidden, params)
    return out[0], h_new


# --------------------------------------------------------------------- reference / test


def init_params(key, input_size, hidden_size, output_size):
    ks = jax.random.split(key, 6)
    scale = 0.1
    wi = scale * jax.random.normal(ks[0], (input_size, hidden_size), jnp.float32)
    bi = scale * jax.random.normal(ks[1], (1, hidden_size), jnp.float32)
    wh = scale * jax.random.normal(ks[2], (hidden_size, hidden_size), jnp.float32)
    bh = scale * jax.random.normal(ks[3], (1, hidden_size), jnp.float32)
    wo = scale * jax.random.normal(ks[4], (hidden_size, output_size), jnp.float32)
    bo = scale * jax.random.normal(ks[5], (1, output_size), jnp.float32)
    return (wi, bi, wh, bh, wo, bo)


def rnn_forward_seq_ref(xs, h0, params):
    wi, bi, wh, bh, wo, bo = params

    def step(h, x):
        h_new = jnp.tanh(x @ wi + bi + h @ wh + bh)
        out = jax.nn.log_softmax(h_new @ wo + bo, axis=-1)
        return h_new, out

    h_final, outs = lax.scan(step, h0, xs)
    return outs, h_final


if __name__ == "__main__":
    seq_len = 8
    batch = 2
    input_size = 16
    hidden_size = 32
    output_size = 8

    key = jax.random.PRNGKey(0)
    k_x, k_p = jax.random.split(key)

    xs = jax.random.normal(k_x, (seq_len, batch, input_size), jnp.float32)
    hidden0 = jnp.zeros((batch, hidden_size), jnp.float32)   # RNN.init_hidden()
    params = init_params(k_p, input_size, hidden_size, output_size)

    outs, h_final = rnn_forward_seq(xs, hidden0, params)
    jax.block_until_ready((outs, h_final))

    outs_ref, h_ref = rnn_forward_seq_ref(xs, hidden0, params)

    # bf16 MXU inputs with f32 accumulation -> small deviation from the f32 reference.
    assert jnp.allclose(outs, outs_ref, atol=2e-2), "sequence output mismatch"
    assert jnp.allclose(h_final, h_ref, atol=2e-2), "final hidden mismatch"

    # Single-step path (exact module forward signature) also works.
    out1, h1 = rnn_forward(xs[0], hidden0, params)
    jax.block_until_ready((out1, h1))
    assert jnp.allclose(out1, outs_ref[0], atol=2e-2), "single-step output mismatch"
    assert jnp.allclose(h1, rnn_forward_seq_ref(xs[:1], hidden0, params)[1],
                        atol=2e-2), "single-step hidden mismatch"

    print("KERNEL_OK")
</pallas_src>

<mosaic_0001>
module attributes {stable_mosaic.version = 11 : i64} {
  func.func @_proj_kernel(%arg0: i32, %arg1: memref<128x128xbf16, #tpu.memory_space<vmem>>, %arg2: memref<128x128xbf16, #tpu.memory_space<vmem>>, %arg3: memref<1x128xf32, #tpu.memory_space<vmem>>, %arg4: memref<128x128xf32, #tpu.memory_space<vmem>>) attributes {dimension_semantics = [#tpu.dimension_semantics<parallel>], iteration_bounds = array<i64: 1>, scalar_prefetch = 0 : i64, scratch_operands = 0 : i64, tpu.core_type = #tpu.core_type<tc>, window_params = [{transform_indices = @transform_0, window_bounds = array<i64: 128, 128>}, {pipeline_mode = #tpu.pipeline_mode<synchronous>, transform_indices = @transform_1, window_bounds = array<i64: 128, 128>}, {pipeline_mode = #tpu.pipeline_mode<synchronous>, transform_indices = @transform_2, window_bounds = array<i64: 1, 128>}, {transform_indices = @transform_3, window_bounds = array<i64: 128, 128>}]} {
    %c0 = arith.constant 0 : index
    %c0_0 = arith.constant 0 : index
    %0 = vector.load %arg1[%c0, %c0_0] : memref<128x128xbf16, #tpu.memory_space<vmem>>, vector<128x128xbf16>
    %c0_1 = arith.constant 0 : index
    %c0_2 = arith.constant 0 : index
    %1 = vector.load %arg2[%c0_1, %c0_2] : memref<128x128xbf16, #tpu.memory_space<vmem>>, vector<128x128xbf16>
    %cst = arith.constant dense<0.000000e+00> : vector<128x128xf32>
    %2 = tpu.matmul %0, %1, %cst {dimension_numbers = #tpu.dot_dimension_numbers<[1], [0], [0], [1], [0, 0, 1, 1], [], []>} : vector<128x128xbf16>, vector<128x128xbf16>, vector<128x128xf32> -> vector<128x128xf32>
    %c0_3 = arith.constant 0 : index
    %c0_4 = arith.constant 0 : index
    %3 = vector.load %arg3[%c0_3, %c0_4] : memref<1x128xf32, #tpu.memory_space<vmem>>, vector<1x128xf32>
    %4 = vector.broadcast %3 : vector<1x128xf32> to vector<128x128xf32>
    %5 = arith.addf %2, %4 : vector<128x128xf32>
    %c0_5 = arith.constant 0 : index
    %c0_6 = arith.constant 0 : index
    %6 = vector.load %arg4[%c0_5, %c0_6] : memref<128x128xf32, #tpu.memory_space<vmem>>, vector<128x128xf32>
    tpu.vector_store %arg4[%c0_5, %c0_6], %5 {strides = array<i32>} : memref<128x128xf32, #tpu.memory_space<vmem>>, vector<128x128xf32>,
    return
  }
  func.func @transform_0(%arg0: i32) -> (i32, i32) {
    %c0_i32 = arith.constant 0 : i32
    %c0_i32_0 = arith.constant 0 : i32
    return %arg0, %c0_i32 : i32, i32
  }
  func.func @transform_1(%arg0: i32) -> (i32, i32) {
    %c0_i32 = arith.constant 0 : i32
    %c0_i32_0 = arith.constant 0 : i32
    %c0_i32_1 = arith.constant 0 : i32
    return %c0_i32, %c0_i32_0 : i32, i32
  }
  func.func @transform_2(%arg0: i32) -> (i32, i32) {
    %c0_i32 = arith.constant 0 : i32
    %c0_i32_0 = arith.constant 0 : i32
    %c0_i32_1 = arith.constant 0 : i32
    return %c0_i32, %c0_i32_0 : i32, i32
  }
  func.func @transform_3(%arg0: i32) -> (i32, i32) {
    %c0_i32 = arith.constant 0 : i32
    %c0_i32_0 = arith.constant 0 : i32
    return %arg0, %c0_i32 : i32, i32
  }
}

</mosaic_0001>

<llo_original>
// kernel: tpu_custom_call.1
$region0: #{tpu_custom_call.1}
  #allocation0 [shape = 'u32[]', space=smem, size = 0x4, offset = 0x4, fixed_abs, tag = 'smem constant byte address 0x4 - core index']
  #allocation1 [shape = 'u32[144,128]{1,0:T(1,128)}', space=vmem, size = 0x12000, scoped, tag = 'internal scratch']
  %s0 = inlined_call_operand.hbm [shape: bf16[128,128], index: 0, kind: input, shape index: {}]
  %s1 = inlined_call_operand.hbm [shape: bf16[128,128], index: 1, kind: input, shape index: {}]
  %s2 = inlined_call_operand.vmem [shape: f32[1,128], index: 2, kind: input, shape index: {}]
  %s3 = inlined_call_operand.hbm [shape: f32[128,128], index: 3, kind: output, shape index: {}]
  %s4 = sld [smem:[#allocation0]]
  $region30: #{tpu_custom_call.1} parent=0
    _
  %s6 = ssub.s32 1, %s4
  %s7 = scalar_select 0, %s6, %s4
  $region1: #{tpu_custom_call.1} parent=0
    #allocation2 [shape = 'u8[32768]{0}', space=vmem, size = 0x8000, scoped, tag = 'input window, operand 0, single buffered']
    #allocation3 [shape = 's32[1]{0}', space=sflag, size = 0x4, scoped, tag = 'scoped memory for tpu_custom_call.1']
    #allocation4 [shape = 's32[1]{0}', space=sflag, size = 0x4, scoped, tag = 'scoped memory for tpu_custom_call.1']
    #allocation5 [shape = 'u8[32768]{0}', space=vmem, size = 0x8000, scoped, tag = 'input window, operand 1, single buffered']
    #allocation6 [shape = 's32[1]{0}', space=sflag, size = 0x4, scoped, tag = 'scoped memory for tpu_custom_call.1']
    #allocation7 [shape = 'u8[65536]{0}', space=vmem, size = 0x10000, scoped, tag = 'output window, operand 0, single buffered']
    %8 = vsyncpa [#allocation3], 0
    %9 = vsyncpa [#allocation6], 0
    %10 = vsyncpa [#allocation4], 0
    // Predicated region
    $region2: #{tpu_custom_call.1} parent=1 // pred_check
      _
    $region3: #{tpu_custom_call.1} parent=1 // pred_check_branch
      %12 = sbr.rel (0) target = $region5
    $region4: #{tpu_custom_call.1} parent=1 // pred_region
      %s14 = ssub.s32 1024, 1024
      %15 = vsyncadd [#allocation3], %s14
      %s16 = sshll.u32 [#allocation2], 4
      %s17 = int_to_ptr.vmem [resolvable:$true] %s16
      %22 = dma.hbm_to_vmem [thread:$0]  %s0, 1024, %s17, [#allocation3], 64, 64, 4
    $region5: #{tpu_custom_call.1} parent=1 // pred_fallthru
      _
    // Predicated region
    $region6: #{tpu_custom_call.1} parent=1 // pred_check
      _
    $region7: #{tpu_custom_call.1} parent=1 // pred_check_branch
      %24 = sbr.rel (0) target = $region9
    $region8: #{tpu_custom_call.1} parent=1 // pred_region
      %s26 = ssub.s32 1024, 1024
      %27 = vsyncadd [#allocation6], %s26
      %s28 = sshll.u32 [#allocation5], 4
      %s29 = int_to_ptr.vmem [resolvable:$true] %s28
      %34 = dma.hbm_to_vmem [thread:$0]  %s1, 1024, %s29, [#allocation6], 64, 64, 4
    $region9: #{tpu_custom_call.1} parent=1 // pred_fallthru
      _
    // Predicated region
    $region10: #{tpu_custom_call.1} parent=1 // pred_check
      _
    $region11: #{tpu_custom_call.1} parent=1 // pred_check_branch
      %36 = sbr.rel (0) target = $region13
    $region12: #{tpu_custom_call.1} parent=1 // pred_region
      _
    $region13: #{tpu_custom_call.1} parent=1 // pred_fallthru
      _
    // Predicated region
    $region14: #{tpu_custom_call.1} parent=1 // pred_check
      _
    $region15: #{tpu_custom_call.1} parent=1 // pred_check_branch
      %38 = sbr.rel (0) target = $region17
    $region16: #{tpu_custom_call.1} parent=1 // pred_region
      %39 = dma.done [#allocation3], 1024
    $region17: #{tpu_custom_call.1} parent=1 // pred_fallthru
      _
    // Predicated region
    $region18: #{tpu_custom_call.1} parent=1 // pred_check
      _
    $region19: #{tpu_custom_call.1} parent=1 // pred_check_branch
      %41 = sbr.rel (0) target = $region21
    $region20: #{tpu_custom_call.1} parent=1 // pred_region
      %42 = dma.done [#allocation6], 1024
    $region21: #{tpu_custom_call.1} parent=1 // pred_fallthru
      _
    %v44 = vld [vmem:[#allocation2] sm:$0xf]
    %v45 = vld [vmem:[#allocation2 + $0x4] sm:$0xf]
    %v46 = vld [vmem:[#allocation2 + $0x8] sm:$0xf]
    %v47 = vld [vmem:[#allocation2 + $0xc] sm:$0xf]
    %v48 = vld [vmem:[#allocation2 + $0x10] sm:$0xf]
    %v49 = vld [vmem:[#allocation2 + $0x14] sm:$0xf]
    %v50 = vld [vmem:[#allocation2 + $0x18] sm:$0xf]
    %v51 = vld [vmem:[#allocation2 + $0x1c] sm:$0xf]
    %v52 = vld [vmem:[#allocation2 + $0x20] sm:$0xf]
    %v53 = vld [vmem:[#allocation2 + $0x24] sm:$0xf]
    %v54 = vld [vmem:[#allocation2 + $0x28] sm:$0xf]
    %v55 = vld [vmem:[#allocation2 + $0x2c] sm:$0xf]
    %v56 = vld [vmem:[#allocation2 + $0x30] sm:$0xf]
    %v57 = vld [vmem:[#allocation2 + $0x34] sm:$0xf]
    %v58 = vld [vmem:[#allocation2 + $0x38] sm:$0xf]
    %v59 = vld [vmem:[#allocation2 + $0x3c] sm:$0xf]
    %v60 = vld [vmem:[#allocation5] sm:$0xf]
    %v61 = vld [vmem:[#allocation5 + $0x4] sm:$0xf]
    %v62 = vld [vmem:[#allocation5 + $0x8] sm:$0xf]
    %v63 = vld [vmem:[#allocation5 + $0xc] sm:$0xf]
    %v64 = vld [vmem:[#allocation5 + $0x10] sm:$0xf]
    %v65 = vld [vmem:[#allocation5 + $0x14] sm:$0xf]
    %v66 = vld [vmem:[#allocation5 + $0x18] sm:$0xf]
    %v67 = vld [vmem:[#allocation5 + $0x1c] sm:$0xf]
    %v68 = vld [vmem:[#allocation5 + $0x20] sm:$0xf]
    %v69 = vld [vmem:[#allocation5 + $0x24] sm:$0xf]
    %v70 = vld [vmem:[#allocation5 + $0x28] sm:$0xf]
    %v71 = vld [vmem:[#allocation5 + $0x2c] sm:$0xf]
    %v72 = vld [vmem:[#allocation5 + $0x30] sm:$0xf]
    %v73 = vld [vmem:[#allocation5 + $0x34] sm:$0xf]
    %v74 = vld [vmem:[#allocation5 + $0x38] sm:$0xf]
    %v75 = vld [vmem:[#allocation5 + $0x3c] sm:$0xf]
    %v76 = vld [vmem:[%s2] sm:$0x1]
    %v78 = vlaneseq
    %v79 = vshrl.u32 %v78, 7
    %v80 = vsub.s32 0, %v79
    %v81 = vrot.slane %v76, %v80
    %v99 = vunpack.c.l.b16 %v44
    %v100 = vunpack.c.l.b16 %v45
    %v101 = vunpack.c.l.b16 %v46
    %v102 = vunpack.c.l.b16 %v47
    %v103 = vunpack.c.l.b16 %v48
    %v104 = vunpack.c.l.b16 %v49
    %v105 = vunpack.c.l.b16 %v50
    %v106 = vunpack.c.l.b16 %v51
    %v107 = vunpack.c.l.b16 %v52
    %v108 = vunpack.c.l.b16 %v53
    %v109 = vunpack.c.l.b16 %v54
    %v110 = vunpack.c.l.b16 %v55
    %v111 = vunpack.c.l.b16 %v56
    %v112 = vunpack.c.l.b16 %v57
    %v113 = vunpack.c.l.b16 %v58
    %v114 = vunpack.c.l.b16 %v59
    %v115 = vpack.c.b16 %v100, %v99
    %v116 = vpack.c.b16 %v102, %v101
    %v117 = vpack.c.b16 %v104, %v103
    %v118 = vpack.c.b16 %v106, %v105
    %v119 = vpack.c.b16 %v108, %v107
    %v120 = vpack.c.b16 %v110, %v109
    %v121 = vpack.c.b16 %v112, %v111
    %v122 = vpack.c.b16 %v114, %v113
    %v147 = vunpack.c.l.b16 %v60
    %v148 = vunpack.c.l.b16 %v61
    %v149 = vunpack.c.l.b16 %v62
    %v150 = vunpack.c.l.b16 %v63
    %v151 = vunpack.c.l.b16 %v64
    %v152 = vunpack.c.l.b16 %v65
    %v153 = vunpack.c.l.b16 %v66
    %v154 = vunpack.c.l.b16 %v67
    %v155 = vunpack.c.l.b16 %v68
    %v156 = vunpack.c.l.b16 %v69
    %v157 = vunpack.c.l.b16 %v70
    %v158 = vunpack.c.l.b16 %v71
    %v159 = vunpack.c.l.b16 %v72
    %v160 = vunpack.c.l.b16 %v73
    %v161 = vunpack.c.l.b16 %v74
    %v162 = vunpack.c.l.b16 %v75
    %v163 = vpack.c.b16 %v148, %v147
    %v164 = vpack.c.b16 %v150, %v149
    %v165 = vpack.c.b16 %v152, %v151
    %v166 = vpack.c.b16 %v154, %v153
    %v167 = vpack.c.b16 %v156, %v155
    %v168 = vpack.c.b16 %v158, %v157
    %v169 = vpack.c.b16 %v160, %v159
    %v170 = vpack.c.b16 %v162, %v161
    %179 = vmatprep.subr.bf16.mxu0 0
    %180 = vmatpush1.bf16.msra.mxu0 %v163
    %181 = vmatprep.subr.bf16.mxu0 0
    %182 = vmatpush1.bf16.msra.mxu0 %v164
    %183 = vmatprep.subr.bf16.mxu0 0
    %184 = vmatpush1.bf16.msra.mxu0 %v165
    %185 = vmatprep.subr.bf16.mxu0 0
    %186 = vmatpush1.bf16.msra.mxu0 %v166
    %187 = vmatprep.subr.bf16.mxu0 0
    %188 = vmatpush1.bf16.msra.mxu0 %v167
    %189 = vmatprep.subr.bf16.mxu0 0
    %190 = vmatpush1.bf16.msra.mxu0 %v168
    %191 = vmatprep.subr.bf16.mxu0 0
    %192 = vmatpush1.bf16.msra.mxu0 %v169
    %193 = vmatprep.subr.bf16.mxu0 0
    %194 = vmatpush1.bf16.msra.mxu0 %v170
    %195 = vmatprep.subr.bf16.mxu0 0
    %196 = vmatpush1.bf16.msra.mxu0 0
    %197 = vmatprep.subr.bf16.mxu0 0
    %198 = vmatpush1.bf16.msra.mxu0 0
    %199 = vmatprep.subr.bf16.mxu0 0
    %200 = vmatpush1.bf16.msra.mxu0 0
    %201 = vmatprep.subr.bf16.mxu0 0
    %202 = vmatpush1.bf16.msra.mxu0 0
    %203 = vmatprep.subr.bf16.mxu0 0
    %204 = vmatpush1.bf16.msra.mxu0 0
    %205 = vmatprep.subr.bf16.mxu0 0
    %206 = vmatpush1.bf16.msra.mxu0 0
    %207 = vmatprep.subr.bf16.mxu0 0
    %208 = vmatpush1.bf16.msra.mxu0 0
    %209 = vmatprep.subr.bf16.mxu0 0
    %210 = vmatpush1.bf16.msra.mxu0 0
    %211 = vmatprep.mubr.bf16.mxu0 0
    %212 = vmatmul.mubr.bf16.gmra.mrb[0].mxu0 %v115
    %v213 = vpop.f32.mrb[0].mxu0
    %v214 = vadd.f32 %v81, %v213
    %v215 = vpop.f32.mrb[0].mxu0
    %v216 = vpop.f32.mrb[0].mxu0
    %v217 = vadd.f32 %v81, %v216
    %v218 = vpop.f32.mrb[0].mxu0
    %219 = vmatprep.mubr.bf16.mxu0 0
    %220 = vmatmul.mubr.bf16.gmra.mrb[0].mxu0 %v116
    %v221 = vpop.f32.mrb[0].mxu0
    %v222 = vadd.f32 %v81, %v221
    %v223 = vpop.f32.mrb[0].mxu0
    %v224 = vpop.f32.mrb[0].mxu0
    %v225 = vadd.f32 %v81, %v224
    %v226 = vpop.f32.mrb[0].mxu0
    %227 = vmatprep.mubr.bf16.mxu0 0
    %228 = vmatmul.mubr.bf16.gmra.mrb[0].mxu0 %v117
    %v229 = vpop.f32.mrb[0].mxu0
    %v230 = vadd.f32 %v81, %v229
    %v231 = vpop.f32.mrb[0].mxu0
    %v232 = vpop.f32.mrb[0].mxu0
    %v233 = vadd.f32 %v81, %v232
    %v234 = vpop.f32.mrb[0].mxu0
    %235 = vmatprep.mubr.bf16.mxu0 0
    %236 = vmatmul.mubr.bf16.gmra.mrb[0].mxu0 %v118
    %v237 = vpop.f32.mrb[0].mxu0
    %v238 = vadd.f32 %v81, %v237
    %v239 = vpop.f32.mrb[0].mxu0
    %v240 = vpop.f32.mrb[0].mxu0
    %v241 = vadd.f32 %v81, %v240
    %v242 = vpop.f32.mrb[0].mxu0
    %243 = vmatprep.mubr.bf16.mxu0 0
    %244 = vmatmul.mubr.bf16.gmra.mrb[0].mxu0 %v119
    %v245 = vpop.f32.mrb[0].mxu0
    %v246 = vadd.f32 %v81, %v245
    %v247 = vpop.f32.mrb[0].mxu0
    %v248 = vpop.f32.mrb[0].mxu0
    %v249 = vadd.f32 %v81, %v248
    %v250 = vpop.f32.mrb[0].mxu0
    %251 = vmatprep.mubr.bf16.mxu0 0
    %252 = vmatmul.mubr.bf16.gmra.mrb[0].mxu0 %v120
    %v253 = vpop.f32.mrb[0].mxu0
    %v254 = vadd.f32 %v81, %v253
    %v255 = vpop.f32.mrb[0].mxu0
    %v256 = vpop.f32.mrb[0].mxu0
    %v257 = vadd.f32 %v81, %v256
    %v258 = vpop.f32.mrb[0].mxu0
    %259 = vmatprep.mubr.bf16.mxu0 0
    %260 = vmatmul.mubr.bf16.gmra.mrb[0].mxu0 %v121
    %v261 = vpop.f32.mrb[0].mxu0
    %v262 = vadd.f32 %v81, %v261
    %v263 = vpop.f32.mrb[0].mxu0
    %v264 = vpop.f32.mrb[0].mxu0
    %v265 = vadd.f32 %v81, %v264
    %v266 = vpop.f32.mrb[0].mxu0
    %267 = vmatprep.mubr.bf16.mxu0 0
    %268 = vmatmul.mubr.bf16.gmra.mrb[0].mxu0 %v122
    %v269 = vpop.f32.mrb[0].mxu0
    %v270 = vadd.f32 %v81, %v269
    %v271 = vpop.f32.mrb[0].mxu0
    %v272 = vpop.f32.mrb[0].mxu0
    %v273 = vadd.f32 %v81, %v272
    %v274 = vpop.f32.mrb[0].mxu0
    %275 = vdwg.mxu0
    %276 = vst [vmem:[#allocation7] sm:$0xff] %v214
    %277 = vst [vmem:[#allocation7 + $0x8] sm:$0xff] %v217
    %278 = vst [vmem:[#allocation7 + $0x10] sm:$0xff] %v222
    %279 = vst [vmem:[#allocation7 + $0x18] sm:$0xff] %v225
    %280 = vst [vmem:[#allocation7 + $0x20] sm:$0xff] %v230
    %281 = vst [vmem:[#allocation7 + $0x28] sm:$0xff] %v233
    %282 = vst [vmem:[#allocation7 + $0x30] sm:$0xff] %v238
    %283 = vst [vmem:[#allocation7 + $0x38] sm:$0xff] %v241
    %284 = vst [vmem:[#allocation7 + $0x40] sm:$0xff] %v246
    %285 = vst [vmem:[#allocation7 + $0x48] sm:$0xff] %v249
    %286 = vst [vmem:[#allocation7 + $0x50] sm:$0xff] %v254
    %287 = vst [vmem:[#allocation7 + $0x58] sm:$0xff] %v257
    %288 = vst [vmem:[#allocation7 + $0x60] sm:$0xff] %v262
    %289 = vst [vmem:[#allocation7 + $0x68] sm:$0xff] %v265
    %290 = vst [vmem:[#allocation7 + $0x70] sm:$0xff] %v270
    %291 = vst [vmem:[#allocation7 + $0x78] sm:$0xff] %v273
    // Predicated region
    $region22: #{tpu_custom_call.1} parent=1 // pred_check
      _
    $region23: #{tpu_custom_call.1} parent=1 // pred_check_branch
      %293 = sbr.rel (0) target = $region25
    $region24: #{tpu_custom_call.1} parent=1 // pred_region
      %s295 = ssub.s32 2048, 2048
      %296 = vsyncadd [#allocation4], %s295
      %s297 = sshll.u32 [#allocation7], 4
      %s298 = int_to_ptr.vmem [resolvable:$true] %s297
      %303 = dma.vmem_to_hbm [thread:$0]  %s298, 2048, %s3, [#allocation4], 128, 128, 8
    $region25: #{tpu_custom_call.1} parent=1 // pred_fallthru
      _
    // Predicated region
    $region26: #{tpu_custom_call.1} parent=1 // pred_check
      _
    $region27: #{tpu_custom_call.1} parent=1 // pred_check_branch
      %305 = sbr.rel (0) target = $region29
    $region28: #{tpu_custom_call.1} parent=1 // pred_region
      %306 = dma.done [#allocation4], 2048
    $region29: #{tpu_custom_call.1} parent=1 // pred_fallthru
      _
    %307 = vsyncpa [#allocation3], 1
    %308 = vsyncpa [#allocation6], 1
    %309 = vsyncpa [#allocation4], 1

</llo_original>
